<compile_context>
chip_gen: v7x
topology: tpu7x:2x2x1
jax: 0.10.0
libtpu: 0.0.40
codegen_flags: <defaults>
</compile_context>

<pallas_src>
import jax
import jax.numpy as jnp
from jax import lax
from jax.experimental import pallas as pl
from jax.experimental.pallas import tpu as pltpu

# ---- problem sizes (small, consistent with the module) ----
B = 2              # batch
T = 8              # target_len
S = 8              # source_len (== T for self-attention)
E = 32             # embed_dim
H = 4              # num_heads
D = E // H         # head_dim
N = B * T          # batch folded into the lane (column) dimension
SCALING = float(D) ** 0.5        # module: self.scaling = head_dim ** 0.5 (multiplicative)
NEG = -1e30                      # finite "minus infinity" for off-block mask entries


def detr_attention_kernel(rhs_ref, mask_ref, w_ref, b_ref, out_ref, attn_ref):
    """Single invocation, whole problem.

    rhs_ref  : (E, 2N)   feature-major activations; cols 0:N = (hs+oq)^T (q/k source),
                         cols N:2N = hs^T (v source)
    mask_ref : (1, N, N) additive mask: attention_mask on per-batch diagonal blocks,
                         -1e30 off-block (fused softmax then equals per-batch softmax)
    w_ref    : (4E, E)   [Wq; Wk; Wv; Wo] in PyTorch (out_features, in_features) layout
    b_ref    : (4E, 1)   [bq; bk; bv; bo] as a column
    out_ref  : (E, N)    attention output, feature-major
    attn_ref : (H, N, N) fused softmax weights (per-batch blocks extracted in wrapper)
    """
    rhs = rhs_ref[...]                      # (E, 2N)
    w = w_ref[...]                          # (4E, E)
    b = b_ref[...]                          # (4E, 1)

    # ---- single fused Q/K/V projection: ONE (3E,E)@(E,2N) MXU push ------------------
    proj = jnp.dot(w[0:3 * E], rhs, preferred_element_type=jnp.float32)    # (3E, 2N)
    q_T = (proj[0:E, 0:N] + b[0:E]) * SCALING            # (E, N)  bias scaled too (as in module)
    k_T = proj[E:2 * E, 0:N] + b[E:2 * E]                # (E, N)
    v_T = proj[2 * E:3 * E, N:2 * N] + b[2 * E:3 * E]    # (E, N)  value from original hs columns

    # ---- head split: pure sublane-tile splits (D == 8), no lane<->sublane relayout --
    q_h = q_T.reshape(H, D, N)
    k_h = k_T.reshape(H, D, N)
    v_h = v_T.reshape(H, D, N)

    # scores[h,n,m] = sum_d q_h[h,d,n] * k_h[h,d,m]
    # contraction on dim 1 of both operands -> operand transposes folded into the MXU feed
    scores = lax.dot_general(q_h, k_h, (((1,), (1,)), ((0,), (0,))),
                             preferred_element_type=jnp.float32)           # (H, N, N)
    scores = scores + mask_ref[...]                                        # broadcast over H

    # softmax over the fused (batch-blocked) key axis; off-block probs become exactly 0
    scores = scores - jnp.max(scores, axis=-1, keepdims=True)
    ex = jnp.exp(scores)
    probs = ex * pl.reciprocal(jnp.sum(ex, axis=-1, keepdims=True), approx=True)
    attn_ref[...] = probs                                                  # single store

    # ctx[h,d,n] = sum_m v_h[h,d,m] * probs[h,n,m]   (cross-batch terms contribute 0)
    ctx = lax.dot_general(v_h, probs, (((2,), (2,)), ((0,), (0,))),
                          preferred_element_type=jnp.float32)              # (H, D, N)

    # merge heads (tile merge, free) and apply out_proj in one (E,E)@(E,N) push
    ao_T = ctx.reshape(E, N)                                               # (E, N)
    out_ref[...] = jnp.dot(w[3 * E:4 * E], ao_T,
                           preferred_element_type=jnp.float32) + b[3 * E:4 * E]


@jax.jit
def detr_attention(hidden_states, object_queries, attention_mask,
                   wq, bq, wk, bk, wv, bv, wo, bo):
    """hidden_states/object_queries: (B,T,E); attention_mask: (B,1,T,S);
    weights in PyTorch nn.Linear layout (out_features, in_features); biases (E,)."""
    # with_pos_embed + feature-major operand packing (review item 1, wrapper-side option):
    # cols 0:N drive q/k (x = hs + oq), cols N:2N drive v (original hs).
    x = hidden_states + object_queries
    rhs = jnp.concatenate([x.reshape(N, E), hidden_states.reshape(N, E)], axis=0).T  # (E, 2N)

    # all parameters packed into two operands
    w_all = jnp.concatenate([wq, wk, wv, wo], axis=0)                        # (4E, E)
    b_all = jnp.concatenate([bq, bk, bv, bo], axis=0).reshape(4 * E, 1)      # (4E, 1)

    # (N,N) additive mask: attention_mask values on the per-batch diagonal blocks,
    # -1e30 off-block so the fused softmax reproduces the per-batch softmax exactly.
    mask_nn = jnp.full((N, N), NEG, dtype=jnp.float32)
    for bi in range(B):
        mask_nn = mask_nn.at[bi * T:(bi + 1) * T, bi * S:(bi + 1) * S].set(
            attention_mask[bi, 0])
    mask_nn = mask_nn[None]                                                  # (1, N, N)

    vmem = pl.BlockSpec(memory_space=pltpu.MemorySpace.VMEM)
    out_T, probs_all = pl.pallas_call(
        detr_attention_kernel,
        out_shape=(
            jax.ShapeDtypeStruct((E, N), jnp.float32),
            jax.ShapeDtypeStruct((H, N, N), jnp.float32),
        ),
        in_specs=[vmem, vmem, vmem, vmem],
        out_specs=(vmem, vmem),
    )(rhs, mask_nn, w_all, b_all)

    # layout fix-ups outside the kernel (plain XLA)
    out = out_T.T.reshape(B, T, E)
    attn = jnp.stack(
        [probs_all[:, bi * T:(bi + 1) * T, bi * S:(bi + 1) * S] for bi in range(B)],
        axis=0)                                                              # (B, H, T, S)
    return out, attn


def detr_attention_ref(hidden_states, object_queries, attention_mask,
                       wq, bq, wk, bk, wv, bv, wo, bo):
    """Pure-JAX reference mirroring the PyTorch forward (self-attention, eval)."""
    x = hidden_states + object_queries
    q = (x @ wq.T + bq) * SCALING
    k = x @ wk.T + bk
    v = hidden_states @ wv.T + bv

    def split(t):  # (B,T,E) -> (B,H,T,D)
        return t.reshape(B, -1, H, D).transpose(0, 2, 1, 3)

    qh, kh, vh = split(q), split(k), split(v)
    scores = jnp.einsum("bhtd,bhsd->bhts", qh, kh) + attention_mask
    probs = jax.nn.softmax(scores, axis=-1)
    o = jnp.einsum("bhts,bhsd->bhtd", probs, vh)
    o = o.transpose(0, 2, 1, 3).reshape(B, T, E)
    return o @ wo.T + bo, probs


if __name__ == "__main__":
    key = jax.random.PRNGKey(0)
    keys = jax.random.split(key, 12)

    hidden_states = jax.random.normal(keys[0], (B, T, E), dtype=jnp.float32)
    object_queries = jax.random.normal(keys[1], (B, T, E), dtype=jnp.float32) * 0.1
    attention_mask = jax.random.normal(keys[2], (B, 1, T, S), dtype=jnp.float32) * 0.5

    # Deterministic params (PyTorch nn.Linear weight shape: (out_features, in_features)).
    init = lambda k, shape, scale: jax.random.normal(k, shape, dtype=jnp.float32) * scale
    wq = init(keys[3], (E, E), 0.05); bq = init(keys[4], (E,), 0.05)
    wk = init(keys[5], (E, E), 0.05); bk = init(keys[6], (E,), 0.05)
    wv = init(keys[7], (E, E), 0.05); bv = init(keys[8], (E,), 0.05)
    wo = init(keys[9], (E, E), 0.05); bo = init(keys[10], (E,), 0.05)

    out, attn = detr_attention(hidden_states, object_queries, attention_mask,
                               wq, bq, wk, bk, wv, bv, wo, bo)
    out = jax.block_until_ready(out)
    attn = jax.block_until_ready(attn)

    out_ref, attn_ref = detr_attention_ref(hidden_states, object_queries, attention_mask,
                                           wq, bq, wk, bk, wv, bv, wo, bo)

    assert out.shape == (B, T, E) and attn.shape == (B, H, T, S)
    # Tolerance relaxed (review item 6): the approx EUP reciprocal and any MXU f32
    # pass-precision difference vs. the XLA reference are both well below 3e-3 here.
    assert jnp.allclose(out, out_ref, atol=3e-3, rtol=3e-3)
    assert jnp.allclose(attn, attn_ref, atol=3e-3, rtol=3e-3)
    assert not jnp.any(jnp.isnan(out)) and not jnp.any(jnp.isnan(attn))

    print("KERNEL_OK")
</pallas_src>

<mosaic_0001>
module attributes {stable_mosaic.version = 11 : i64} {
  func.func @detr_attention_kernel(%arg0: memref<32x32xf32, #tpu.memory_space<vmem>>, %arg1: memref<1x16x16xf32, #tpu.memory_space<vmem>>, %arg2: memref<128x32xf32, #tpu.memory_space<vmem>>, %arg3: memref<128x1xf32, #tpu.memory_space<vmem>>, %arg4: memref<32x16xf32, #tpu.memory_space<vmem>>, %arg5: memref<4x16x16xf32, #tpu.memory_space<vmem>>) attributes {dimension_semantics = [], scalar_prefetch = 0 : i64, scratch_operands = 0 : i64, tpu.core_type = #tpu.core_type<tc>} {
    %c0 = arith.constant 0 : index
    %c0_0 = arith.constant 0 : index
    %0 = vector.load %arg0[%c0, %c0_0] : memref<32x32xf32, #tpu.memory_space<vmem>>, vector<32x32xf32>
    %c0_1 = arith.constant 0 : index
    %c0_2 = arith.constant 0 : index
    %1 = vector.load %arg2[%c0_1, %c0_2] : memref<128x32xf32, #tpu.memory_space<vmem>>, vector<128x32xf32>
    %c0_3 = arith.constant 0 : index
    %c0_4 = arith.constant 0 : index
    %2 = vector.load %arg3[%c0_3, %c0_4] : memref<128x1xf32, #tpu.memory_space<vmem>>, vector<128x1xf32>
    %3 = vector.extract_strided_slice %1 {offsets = [0, 0], sizes = [96, 32], strides = [1, 1]} : vector<128x32xf32> to vector<96x32xf32>
    %cst = arith.constant dense<0.000000e+00> : vector<96x32xf32>
    %4 = tpu.matmul %3, %0, %cst {dimension_numbers = #tpu.dot_dimension_numbers<[1], [0], [0], [1], [0, 0, 1, 1], [], []>} : vector<96x32xf32>, vector<32x32xf32>, vector<96x32xf32> -> vector<96x32xf32>
    %5 = vector.extract_strided_slice %4 {offsets = [0, 0], sizes = [32, 16], strides = [1, 1]} : vector<96x32xf32> to vector<32x16xf32>
    %6 = vector.extract_strided_slice %2 {offsets = [0, 0], sizes = [32, 1], strides = [1, 1]} : vector<128x1xf32> to vector<32x1xf32>
    %7 = vector.broadcast %6 : vector<32x1xf32> to vector<32x16xf32>
    %8 = arith.addf %5, %7 : vector<32x16xf32>
    %cst_5 = arith.constant 2.82842708 : f32
    %9 = vector.broadcast %cst_5 : f32 to vector<32x16xf32>
    %10 = arith.mulf %8, %9 : vector<32x16xf32>
    %11 = vector.extract_strided_slice %4 {offsets = [32, 0], sizes = [32, 16], strides = [1, 1]} : vector<96x32xf32> to vector<32x16xf32>
    %12 = vector.extract_strided_slice %2 {offsets = [32, 0], sizes = [32, 1], strides = [1, 1]} : vector<128x1xf32> to vector<32x1xf32>
    %13 = vector.broadcast %12 : vector<32x1xf32> to vector<32x16xf32>
    %14 = arith.addf %11, %13 : vector<32x16xf32>
    %15 = vector.extract_strided_slice %4 {offsets = [64, 16], sizes = [32, 16], strides = [1, 1]} : vector<96x32xf32> to vector<32x16xf32>
    %16 = vector.extract_strided_slice %2 {offsets = [64, 0], sizes = [32, 1], strides = [1, 1]} : vector<128x1xf32> to vector<32x1xf32>
    %17 = vector.broadcast %16 : vector<32x1xf32> to vector<32x16xf32>
    %18 = arith.addf %15, %17 : vector<32x16xf32>
    %19 = vector.shape_cast %10 : vector<32x16xf32> to vector<4x8x16xf32>
    %20 = vector.shape_cast %14 : vector<32x16xf32> to vector<4x8x16xf32>
    %21 = vector.shape_cast %18 : vector<32x16xf32> to vector<4x8x16xf32>
    %cst_6 = arith.constant dense<0.000000e+00> : vector<4x16x16xf32>
    %22 = tpu.matmul %19, %20, %cst_6 {dimension_numbers = #tpu.dot_dimension_numbers<[1], [1], [2], [2], [0, 0, 0, 2, 1, 2], [0], [0]>} : vector<4x8x16xf32>, vector<4x8x16xf32>, vector<4x16x16xf32> -> vector<4x16x16xf32>
    %c0_7 = arith.constant 0 : index
    %c0_8 = arith.constant 0 : index
    %c0_9 = arith.constant 0 : index
    %23 = vector.load %arg1[%c0_7, %c0_8, %c0_9] : memref<1x16x16xf32, #tpu.memory_space<vmem>>, vector<1x16x16xf32>
    %24 = vector.broadcast %23 : vector<1x16x16xf32> to vector<4x16x16xf32>
    %25 = arith.addf %22, %24 : vector<4x16x16xf32>
    %cst_10 = arith.constant dense<0xFF800000> : vector<4x16xf32>
    %26 = vector.multi_reduction <maximumf>, %25, %cst_10 [2] : vector<4x16x16xf32> to vector<4x16xf32>
    %27 = vector.shape_cast %26 : vector<4x16xf32> to vector<4x16x1xf32>
    %28 = vector.broadcast %27 : vector<4x16x1xf32> to vector<4x16x16xf32>
    %29 = arith.subf %25, %28 : vector<4x16x16xf32>
    %30 = math.exp %29 : vector<4x16x16xf32>
    %cst_11 = arith.constant dense<0.000000e+00> : vector<4x16xf32>
    %31 = vector.multi_reduction <add>, %30, %cst_11 [2] : vector<4x16x16xf32> to vector<4x16xf32>
    %32 = vector.shape_cast %31 : vector<4x16xf32> to vector<4x16x1xf32>
    %33 = tpu.reciprocal %32 {approx = true} : vector<4x16x1xf32> -> vector<4x16x1xf32>
    %34 = vector.broadcast %33 : vector<4x16x1xf32> to vector<4x16x16xf32>
    %35 = arith.mulf %30, %34 : vector<4x16x16xf32>
    %c0_12 = arith.constant 0 : index
    %c0_13 = arith.constant 0 : index
    %c0_14 = arith.constant 0 : index
    %36 = vector.load %arg5[%c0_12, %c0_13, %c0_14] : memref<4x16x16xf32, #tpu.memory_space<vmem>>, vector<4x16x16xf32>
    tpu.vector_store %arg5[%c0_12, %c0_13, %c0_14], %35 {strides = array<i32>} : memref<4x16x16xf32, #tpu.memory_space<vmem>>, vector<4x16x16xf32>,
    %cst_15 = arith.constant dense<0.000000e+00> : vector<4x8x16xf32>
    %37 = tpu.matmul %21, %35, %cst_15 {dimension_numbers = #tpu.dot_dimension_numbers<[2], [2], [1], [1], [0, 0, 0, 1, 1, 1], [0], [0]>} : vector<4x8x16xf32>, vector<4x16x16xf32>, vector<4x8x16xf32> -> vector<4x8x16xf32>
    %38 = vector.shape_cast %37 : vector<4x8x16xf32> to vector<32x16xf32>
    %39 = vector.extract_strided_slice %1 {offsets = [96, 0], sizes = [32, 32], strides = [1, 1]} : vector<128x32xf32> to vector<32x32xf32>
    %cst_16 = arith.constant dense<0.000000e+00> : vector<32x16xf32>
    %40 = tpu.matmul %39, %38, %cst_16 {dimension_numbers = #tpu.dot_dimension_numbers<[1], [0], [0], [1], [0, 0, 1, 1], [], []>} : vector<32x32xf32>, vector<32x16xf32>, vector<32x16xf32> -> vector<32x16xf32>
    %41 = vector.extract_strided_slice %2 {offsets = [96, 0], sizes = [32, 1], strides = [1, 1]} : vector<128x1xf32> to vector<32x1xf32>
    %42 = vector.broadcast %41 : vector<32x1xf32> to vector<32x16xf32>
    %43 = arith.addf %40, %42 : vector<32x16xf32>
    %c0_17 = arith.constant 0 : index
    %c0_18 = arith.constant 0 : index
    %44 = vector.load %arg4[%c0_17, %c0_18] : memref<32x16xf32, #tpu.memory_space<vmem>>, vector<32x16xf32>
    tpu.vector_store %arg4[%c0_17, %c0_18], %43 {strides = array<i32>} : memref<32x16xf32, #tpu.memory_space<vmem>>, vector<32x16xf32>,
    return
  }
}

</mosaic_0001>

<llo_original>
// kernel: detr_attention.1
$region0: #{detr_attention.1}
  #allocation0 [shape = 'u32[]', space=smem, size = 0x4, offset = 0x4, fixed_abs, tag = 'smem constant byte address 0x4 - core index']
  #allocation1 [shape = 'u32[144,128]{1,0:T(1,128)}', space=vmem, size = 0x12000, scoped, tag = 'internal scratch']
  %s0 = inlined_call_operand.vmem [shape: f32[32,32], index: 0, kind: input, shape index: {}]
  %s1 = inlined_call_operand.vmem [shape: f32[1,16,16], index: 1, kind: input, shape index: {}]
  %s2 = inlined_call_operand.vmem [shape: f32[128,32], index: 2, kind: input, shape index: {}]
  %s3 = inlined_call_operand.vmem [shape: f32[128,1], index: 3, kind: input, shape index: {}]
  %s4 = inlined_call_operand.vmem [shape: f32[32,16], index: 4, kind: output, shape index: {0}]
  %s5 = inlined_call_operand.vmem [shape: f32[4,16,16], index: 5, kind: output, shape index: {1}]
  %6 = xla_tuple %s4, %s5
  %s7 = sld [smem:[#allocation0]]
  $region34: #{detr_attention.1} parent=0
    _
  %s9 = ssub.s32 1, %s7
  %s10 = scalar_select 0, %s9, %s7
  // Predicated region
  $region2: #{detr_attention.1} parent=0 // pred_check
    _
  $region3: #{detr_attention.1} parent=0 // pred_check_branch
    %12 = sbr.rel (0) target = $region5
  $region4: #{detr_attention.1} parent=0 // pred_region
    _
  $region5: #{detr_attention.1} parent=0 // pred_fallthru
    _
  // Predicated region
  $region6: #{detr_attention.1} parent=0 // pred_check
    _
  $region7: #{detr_attention.1} parent=0 // pred_check_branch
    %14 = sbr.rel (0) target = $region9
  $region8: #{detr_attention.1} parent=0 // pred_region
    _
  $region9: #{detr_attention.1} parent=0 // pred_fallthru
    _
  // Predicated region
  $region10: #{detr_attention.1} parent=0 // pred_check
    _
  $region11: #{detr_attention.1} parent=0 // pred_check_branch
    %16 = sbr.rel (0) target = $region13
  $region12: #{detr_attention.1} parent=0 // pred_region
    _
  $region13: #{detr_attention.1} parent=0 // pred_fallthru
    _
  // Predicated region
  $region14: #{detr_attention.1} parent=0 // pred_check
    _
  $region15: #{detr_attention.1} parent=0 // pred_check_branch
    %18 = sbr.rel (0) target = $region17
  $region16: #{detr_attention.1} parent=0 // pred_region
    _
  $region17: #{detr_attention.1} parent=0 // pred_fallthru
    _
  %v19 = vld [vmem:[%s0] sm:$0xff]
  %v20 = vld [vmem:[%s0 + $0x8] sm:$0xff]
  %v21 = vld [vmem:[%s0 + $0x10] sm:$0xff]
  %v22 = vld [vmem:[%s0 + $0x18] sm:$0xff]
  %v23 = vld [vmem:[%s2] sm:$0xff]
  %v24 = vld [vmem:[%s2 + $0x8] sm:$0xff]
  %v25 = vld [vmem:[%s2 + $0x10] sm:$0xff]
  %v26 = vld [vmem:[%s2 + $0x18] sm:$0xff]
  %v27 = vld [vmem:[%s2 + $0x20] sm:$0xff]
  %v28 = vld [vmem:[%s2 + $0x28] sm:$0xff]
  %v29 = vld [vmem:[%s2 + $0x30] sm:$0xff]
  %v30 = vld [vmem:[%s2 + $0x38] sm:$0xff]
  %v31 = vld [vmem:[%s2 + $0x40] sm:$0xff]
  %v32 = vld [vmem:[%s2 + $0x48] sm:$0xff]
  %v33 = vld [vmem:[%s2 + $0x50] sm:$0xff]
  %v34 = vld [vmem:[%s2 + $0x58] sm:$0xff]
  %v35 = vld [vmem:[%s2 + $0x60] sm:$0xff]
  %v36 = vld [vmem:[%s2 + $0x68] sm:$0xff]
  %v37 = vld [vmem:[%s2 + $0x70] sm:$0xff]
  %v38 = vld [vmem:[%s2 + $0x78] sm:$0xff]
  %v39 = vld [vmem:[%s3] sm:$0xff]
  %v40 = vld [vmem:[%s3 + $0x8] sm:$0xff]
  %v41 = vld [vmem:[%s3 + $0x10] sm:$0xff]
  %v42 = vld [vmem:[%s3 + $0x18] sm:$0xff]
  %v43 = vld [vmem:[%s3 + $0x20] sm:$0xff]
  %v44 = vld [vmem:[%s3 + $0x28] sm:$0xff]
  %v45 = vld [vmem:[%s3 + $0x30] sm:$0xff]
  %v46 = vld [vmem:[%s3 + $0x38] sm:$0xff]
  %v47 = vld [vmem:[%s3 + $0x40] sm:$0xff]
  %v48 = vld [vmem:[%s3 + $0x48] sm:$0xff]
  %v49 = vld [vmem:[%s3 + $0x50] sm:$0xff]
  %v50 = vld [vmem:[%s3 + $0x58] sm:$0xff]
  %v51 = vld [vmem:[%s3 + $0x60] sm:$0xff]
  %v52 = vld [vmem:[%s3 + $0x68] sm:$0xff]
  %v53 = vld [vmem:[%s3 + $0x70] sm:$0xff]
  %v54 = vld [vmem:[%s3 + $0x78] sm:$0xff]
  %vm55 = vcmask 261120
  %v57 = vsel %vm55, %v23, 0
  %v60 = vsel %vm55, %v24, 0
  %v63 = vsel %vm55, %v25, 0
  %v66 = vsel %vm55, %v26, 0
  %v69 = vsel %vm55, %v27, 0
  %v72 = vsel %vm55, %v28, 0
  %v75 = vsel %vm55, %v29, 0
  %v78 = vsel %vm55, %v30, 0
  %v81 = vsel %vm55, %v31, 0
  %v84 = vsel %vm55, %v32, 0
  %v87 = vsel %vm55, %v33, 0
  %v90 = vsel %vm55, %v34, 0
  %92 = vmatprep.subr.mxu0 0.0
  %93 = vmatpush1.msra.mxu0 %v19
  %94 = vmatprep.subr.mxu0 0.0
  %95 = vmatpush1.msra.mxu0 %v20
  %96 = vmatprep.subr.mxu0 0.0
  %97 = vmatpush1.msra.mxu0 %v21
  %98 = vmatprep.subr.mxu0 0.0
  %99 = vmatpush1.msra.mxu0 %v22
  %100 = vmatprep.subr.mxu0 0.0
  %101 = vmatpush1.msra.mxu0 0.0
  %102 = vmatprep.subr.mxu0 0.0
  %103 = vmatpush1.msra.mxu0 0.0
  %104 = vmatprep.subr.mxu0 0.0
  %105 = vmatpush1.msra.mxu0 0.0
  %106 = vmatprep.subr.mxu0 0.0
  %107 = vmatpush1.msra.mxu0 0.0
  %108 = vmatprep.subr.mxu0 0.0
  %109 = vmatpush1.msra.mxu0 0.0
  %110 = vmatprep.subr.mxu0 0.0
  %111 = vmatpush1.msra.mxu0 0.0
  %112 = vmatprep.subr.mxu0 0.0
  %113 = vmatpush1.msra.mxu0 0.0
  %114 = vmatprep.subr.mxu0 0.0
  %115 = vmatpush1.msra.mxu0 0.0
  %116 = vmatprep.subr.mxu0 0.0
  %117 = vmatpush1.msra.mxu0 0.0
  %118 = vmatprep.subr.mxu0 0.0
  %119 = vmatpush1.msra.mxu0 0.0
  %120 = vmatprep.subr.mxu0 0.0
  %121 = vmatpush1.msra.mxu0 0.0
  %122 = vmatprep.subr.mxu0 0.0
  %123 = vmatpush1.msra.mxu0 0.0
  %124 = vmatprep.subr.mxu0 0.0
  %125 = vmatpush1.msra.mxu0 0.0
  %126 = vmatprep.subr.mxu0 0.0
  %127 = vmatpush1.msra.mxu0 0.0
  %128 = vmatprep.subr.mxu0 0.0
  %129 = vmatpush1.msra.mxu0 0.0
  %130 = vmatprep.subr.mxu0 0.0
  %131 = vmatpush1.msra.mxu0 0.0
  %132 = vmatprep.subr.mxu0 0.0
  %133 = vmatpush1.msra.mxu0 0.0
  %134 = vmatprep.subr.mxu0 0.0
  %135 = vmatpush1.msra.mxu0 0.0
  %136 = vmatprep.subr.mxu0 0.0
  %137 = vmatpush1.msra.mxu0 0.0
  %138 = vmatprep.subr.mxu0 0.0
  %139 = vmatpush1.msra.mxu0 0.0
  %140 = vmatprep.subr.mxu0 0.0
  %141 = vmatpush1.msra.mxu0 0.0
  %142 = vmatprep.subr.mxu0 0.0
  %143 = vmatpush1.msra.mxu0 0.0
  %144 = vmatprep.subr.mxu0 0.0
  %145 = vmatpush1.msra.mxu0 0.0
  %146 = vmatprep.subr.mxu0 0.0
  %147 = vmatpush1.msra.mxu0 0.0
  %148 = vmatprep.subr.mxu0 0.0
  %149 = vmatpush1.msra.mxu0 0.0
  %150 = vmatprep.subr.mxu0 0.0
  %151 = vmatpush1.msra.mxu0 0.0
  %152 = vmatprep.subr.mxu0 0.0
  %153 = vmatpush1.msra.mxu0 0.0
  %154 = vmatprep.subr.mxu0 0.0
  %155 = vmatpush1.msra.mxu0 0.0
  %156 = vmatprep.mubr.f32.mxu0 0.0
  %157 = vmatmul.mubr.f32.gmra.mrb[0].mxu0 %v57
  %v158 = vpop.f32.mrb[0].mxu0
  %v159 = vadd.f32 0.0, %v158
  %v160 = vpop.f32.mrb[0].mxu0
  %161 = vmatprep.mubr.f32.mxu0 0.0
  %162 = vmatmul.mubr.f32.gmra.mrb[0].mxu0 %v60
  %v163 = vpop.f32.mrb[0].mxu0
  %v164 = vadd.f32 0.0, %v163
  %v165 = vpop.f32.mrb[0].mxu0
  %166 = vmatprep.mubr.f32.mxu0 0.0
  %167 = vmatmul.mubr.f32.gmra.mrb[0].mxu0 %v63
  %v168 = vpop.f32.mrb[0].mxu0
  %v169 = vadd.f32 0.0, %v168
  %v170 = vpop.f32.mrb[0].mxu0
  %171 = vmatprep.mubr.f32.mxu0 0.0
  %172 = vmatmul.mubr.f32.gmra.mrb[0].mxu0 %v66
  %v173 = vpop.f32.mrb[0].mxu0
  %v174 = vadd.f32 0.0, %v173
  %v175 = vpop.f32.mrb[0].mxu0
  %176 = vmatprep.mubr.f32.mxu0 0.0
  %177 = vmatmul.mubr.f32.gmra.mrb[0].mxu0 %v69
  %v178 = vpop.f32.mrb[0].mxu0
  %v179 = vadd.f32 0.0, %v178
  %v180 = vpop.f32.mrb[0].mxu0
  %181 = vmatprep.mubr.f32.mxu0 0.0
  %182 = vmatmul.mubr.f32.gmra.mrb[0].mxu0 %v72
  %v183 = vpop.f32.mrb[0].mxu0
  %v184 = vadd.f32 0.0, %v183
  %v185 = vpop.f32.mrb[0].mxu0
  %186 = vmatprep.mubr.f32.mxu0 0.0
  %187 = vmatmul.mubr.f32.gmra.mrb[0].mxu0 %v75
  %v188 = vpop.f32.mrb[0].mxu0
  %v189 = vadd.f32 0.0, %v188
  %v190 = vpop.f32.mrb[0].mxu0
  %191 = vmatprep.mubr.f32.mxu0 0.0
  %192 = vmatmul.mubr.f32.gmra.mrb[0].mxu0 %v78
  %v193 = vpop.f32.mrb[0].mxu0
  %v194 = vadd.f32 0.0, %v193
  %v195 = vpop.f32.mrb[0].mxu0
  %196 = vmatprep.mubr.f32.mxu0 0.0
  %197 = vmatmul.mubr.f32.gmra.mrb[0].mxu0 %v81
  %v198 = vpop.f32.mrb[0].mxu0
  %v199 = vadd.f32 0.0, %v198
  %v200 = vpop.f32.mrb[0].mxu0
  %201 = vmatprep.mubr.f32.mxu0 0.0
  %202 = vmatmul.mubr.f32.gmra.mrb[0].mxu0 %v84
  %v203 = vpop.f32.mrb[0].mxu0
  %v204 = vadd.f32 0.0, %v203
  %v205 = vpop.f32.mrb[0].mxu0
  %206 = vmatprep.mubr.f32.mxu0 0.0
  %207 = vmatmul.mubr.f32.gmra.mrb[0].mxu0 %v87
  %v208 = vpop.f32.mrb[0].mxu0
  %v209 = vadd.f32 0.0, %v208
  %v210 = vpop.f32.mrb[0].mxu0
  %211 = vmatprep.mubr.f32.mxu0 0.0
  %212 = vmatmul.mubr.f32.gmra.mrb[0].mxu0 %v90
  %v213 = vpop.f32.mrb[0].mxu0
  %v214 = vadd.f32 0.0, %v213
  %v215 = vpop.f32.mrb[0].mxu0
  %216 = vdwg.mxu0
  %218 = vset.pattern.permute.xlu0 0
  %219 = vperm.xlu0 %218, %v39
  %v220 = vpop.permute.xlu0 %219
  %223 = vset.pattern.permute.xlu0 0
  %224 = vperm.xlu0 %223, %v40
  %v225 = vpop.permute.xlu0 %224
  %228 = vset.pattern.permute.xlu0 0
  %229 = vperm.xlu0 %228, %v41
  %v230 = vpop.permute.xlu0 %229
  %233 = vset.pattern.permute.xlu0 0
  %234 = vperm.xlu0 %233, %v42
  %v235 = vpop.permute.xlu0 %234
  %v237 = vadd.f32 %v159, %v220
  %v238 = vadd.f32 %v164, %v225
  %v239 = vadd.f32 %v169, %v230
  %v240 = vadd.f32 %v174, %v235
  %v241 = vmul.f32 %v237, 2.828427
  %v242 = vmul.f32 %v238, 2.828427
  %v243 = vmul.f32 %v239, 2.828427
  %v244 = vmul.f32 %v240, 2.828427
  %246 = vset.pattern.permute.xlu0 0
  %247 = vperm.xlu0 %246, %v43
  %v248 = vpop.permute.xlu0 %247
  %251 = vset.pattern.permute.xlu0 0
  %252 = vperm.xlu0 %251, %v44
  %v253 = vpop.permute.xlu0 %252
  %256 = vset.pattern.permute.xlu0 0
  %257 = vperm.xlu0 %256, %v45
  %v258 = vpop.permute.xlu0 %257
  %261 = vset.pattern.permute.xlu0 0
  %262 = vperm.xlu0 %261, %v46
  %v263 = vpop.permute.xlu0 %262
  %v265 = vadd.f32 %v179, %v248
  %v266 = vadd.f32 %v184, %v253
  %v267 = vadd.f32 %v189, %v258
  %v268 = vadd.f32 %v194, %v263
  %270 = vset.pattern.permute.xlu0 0
  %271 = vperm.xlu0 %270, %v47
  %v272 = vpop.permute.xlu0 %271
  %275 = vset.pattern.permute.xlu0 0
  %276 = vperm.xlu0 %275, %v48
  %v277 = vpop.permute.xlu0 %276
  %280 = vset.pattern.permute.xlu0 0
  %281 = vperm.xlu0 %280, %v49
  %v282 = vpop.permute.xlu0 %281
  %285 = vset.pattern.permute.xlu0 0
  %286 = vperm.xlu0 %285, %v50
  %v287 = vpop.permute.xlu0 %286
  %v289 = vadd.f32 %v199, %v272
  %v290 = vadd.f32 %v204, %v277
  %v291 = vadd.f32 %v209, %v282
  %v292 = vadd.f32 %v214, %v287
  %v293 = vld [vmem:[%s1] sm:$0xff]
  %v294 = vld [vmem:[%s1 + $0x8] sm:$0xff]
  %295 = vxpose.xlu0.b32.start [1/16] %v241, 128
  %296 = vxpose.xlu0.b32.cont [2/16] 0.0, 128
  %297 = vxpose.xlu0.b32.cont [3/16] 0.0, 128
  %298 = vxpose.xlu0.b32.cont [4/16] 0.0, 128
  %299 = vxpose.xlu0.b32.cont [5/16] 0.0, 128
  %300 = vxpose.xlu0.b32.cont [6/16] 0.0, 128
  %301 = vxpose.xlu0.b32.cont [7/16] 0.0, 128
  %302 = vxpose.xlu0.b32.cont [8/16] 0.0, 128
  %303 = vxpose.xlu0.b32.cont [9/16] 0.0, 128
  %304 = vxpose.xlu0.b32.cont [10/16] 0.0, 128
  %305 = vxpose.xlu0.b32.cont [11/16] 0.0, 128
  %306 = vxpose.xlu0.b32.cont [12/16] 0.0, 128
  %307 = vxpose.xlu0.b32.cont [13/16] 0.0, 128
  %308 = vxpose.xlu0.b32.cont [14/16] 0.0, 128
  %309 = vxpose.xlu0.b32.cont [15/16] 0.0, 128
  %310 = vxpose.xlu0.b32.end [16/16] 0.0, 128
  %v311 = vpop.trf.xlu0
  %v312 = vpop.trf.xlu0
  %v313 = vpop.trf.xlu0
  %v314 = vpop.trf.xlu0
  %v315 = vpop.trf.xlu0
  %v316 = vpop.trf.xlu0
  %v317 = vpop.trf.xlu0
  %v318 = vpop.trf.xlu0
  %v319 = vpop.trf.xlu0
  %v320 = vpop.trf.xlu0
  %v321 = vpop.trf.xlu0
  %v322 = vpop.trf.xlu0
  %v323 = vpop.trf.xlu0
  %v324 = vpop.trf.xlu0
  %v325 = vpop.trf.xlu0
  %v326 = vpop.trf.xlu0
  %vm327 = vcmask 64512
  %v329 = vsel %vm327, %v311, 0
  %v332 = vsel %vm327, %v312, 0
  %334 = vmatprep.subr.mxu0 0.0
  %335 = vmatpush1.msra.mxu0 %v265
  %336 = vmatprep.subr.mxu0 0.0
  %337 = vmatpush1.msra.mxu0 0.0
  %338 = vmatprep.subr.mxu0 0.0
  %339 = vmatpush1.msra.mxu0 0.0
  %340 = vmatprep.subr.mxu0 0.0
  %341 = vmatpush1.msra.mxu0 0.0
  %342 = vmatprep.subr.mxu0 0.0
  %343 = vmatpush1.msra.mxu0 0.0
  %344 = vmatprep.subr.mxu0 0.0
  %345 = vmatpush1.msra.mxu0 0.0
  %346 = vmatprep.subr.mxu0 0.0
  %347 = vmatpush1.msra.mxu0 0.0
  %348 = vmatprep.subr.mxu0 0.0
  %349 = vmatpush1.msra.mxu0 0.0
  %350 = vmatprep.subr.mxu0 0.0
  %351 = vmatpush1.msra.mxu0 0.0
  %352 = vmatprep.subr.mxu0 0.0
  %353 = vmatpush1.msra.mxu0 0.0
  %354 = vmatprep.subr.mxu0 0.0
  %355 = vmatpush1.msra.mxu0 0.0
  %356 = vmatprep.subr.mxu0 0.0
  %357 = vmatpush1.msra.mxu0 0.0
  %358 = vmatprep.subr.mxu0 0.0
  %359 = vmatpush1.msra.mxu0 0.0
  %360 = vmatprep.subr.mxu0 0.0
  %361 = vmatpush1.msra.mxu0 0.0
  %362 = vmatprep.subr.mxu0 0.0
  %363 = vmatpush1.msra.mxu0 0.0
  %364 = vmatprep.subr.mxu0 0.0
  %365 = vmatpush1.msra.mxu0 0.0
  %366 = vmatprep.subr.mxu0 0.0
  %367 = vmatpush1.msra.mxu0 0.0
  %368 = vmatprep.subr.mxu0 0.0
  %369 = vmatpush1.msra.mxu0 0.0
  %370 = vmatprep.subr.mxu0 0.0
  %371 = vmatpush1.msra.mxu0 0.0
  %372 = vmatprep.subr.mxu0 0.0
  %373 = vmatpush1.msra.mxu0 0.0
  %374 = vmatprep.subr.mxu0 0.0
  %375 = vmatpush1.msra.mxu0 0.0
  %376 = vmatprep.subr.mxu0 0.0
  %377 = vmatpush1.msra.mxu0 0.0
  %378 = vmatprep.subr.mxu0 0.0
  %379 = vmatpush1.msra.mxu0 0.0
  %380 = vmatprep.subr.mxu0 0.0
  %381 = vmatpush1.msra.mxu0 0.0
  %382 = vmatprep.subr.mxu0 0.0
  %383 = vmatpush1.msra.mxu0 0.0
  %384 = vmatprep.subr.mxu0 0.0
  %385 = vmatpush1.msra.mxu0 0.0
  %386 = vmatprep.subr.mxu0 0.0
  %387 = vmatpush1.msra.mxu0 0.0
  %388 = vmatprep.subr.mxu0 0.0
  %389 = vmatpush1.msra.mxu0 0.0
  %390 = vmatprep.subr.mxu0 0.0
  %391 = vmatpush1.msra.mxu0 0.0
  %392 = vmatprep.subr.mxu0 0.0
  %393 = vmatpush1.msra.mxu0 0.0
  %394 = vmatprep.subr.mxu0 0.0
  %395 = vmatpush1.msra.mxu0 0.0
  %396 = vmatprep.subr.mxu0 0.0
  %397 = vmatpush1.msra.mxu0 0.0
  %398 = vmatprep.mubr.f32.mxu0 0.0
  %399 = vmatmul.mubr.f32.gmra.mrb[0].mxu0 %v329
  %v400 = vpop.f32.mrb[0].mxu0
  %v401 = vadd.f32 %v293, %v400
  %v402 = vpop.f32.mrb[0].mxu0
  %403 = vmatprep.mubr.f32.mxu0 0.0
  %404 = vmatmul.mubr.f32.gmra.mrb[0].mxu0 %v332
  %v405 = vpop.f32.mrb[0].mxu0
  %v406 = vadd.f32 %v294, %v405
  %v407 = vpop.f32.mrb[0].mxu0
  %408 = vdwg.mxu0
  %409 = vxpose.xlu0.b32.start [1/16] %v242, 128
  %410 = vxpose.xlu0.b32.cont [2/16] 0.0, 128
  %411 = vxpose.xlu0.b32.cont [3/16] 0.0, 128
  %412 = vxpose.xlu0.b32.cont [4/16] 0.0, 128
  %413 = vxpose.xlu0.b32.cont [5/16] 0.0, 128
  %414 = vxpose.xlu0.b32.cont [6/16] 0.0, 128
  %415 = vxpose.xlu0.b32.cont [7/16] 0.0, 128
  %416 = vxpose.xlu0.b32.cont [8/16] 0.0, 128
  %417 = vxpose.xlu0.b32.cont [9/16] 0.0, 128
  %418 = vxpose.xlu0.b32.cont [10/16] 0.0, 128
  %419 = vxpose.xlu0.b32.cont [11/16] 0.0, 128
  %420 = vxpose.xlu0.b32.cont [12/16] 0.0, 128
  %421 = vxpose.xlu0.b32.cont [13/16] 0.0, 128
  %422 = vxpose.xlu0.b32.cont [14/16] 0.0, 128
  %423 = vxpose.xlu0.b32.cont [15/16] 0.0, 128
  %424 = vxpose.xlu0.b32.end [16/16] 0.0, 128
  %v425 = vpop.trf.xlu0
  %v426 = vpop.trf.xlu0
  %v427 = vpop.trf.xlu0
  %v428 = vpop.trf.xlu0
  %v429 = vpop.trf.xlu0
  %v430 = vpop.trf.xlu0
  %v431 = vpop.trf.xlu0
  %v432 = vpop.trf.xlu0
  %v433 = vpop.trf.xlu0
  %v434 = vpop.trf.xlu0
  %v435 = vpop.trf.xlu0
  %v436 = vpop.trf.xlu0
  %v437 = vpop.trf.xlu0
  %v438 = vpop.trf.xlu0
  %v439 = vpop.trf.xlu0
  %v440 = vpop.trf.xlu0
  %v442 = vsel %vm327, %v425, 0
  %v445 = vsel %vm327, %v426, 0
  %447 = vmatprep.subr.mxu0 0.0
  %448 = vmatpush1.msra.mxu0 %v266
  %449 = vmatprep.subr.mxu0 0.0
  %450 = vmatpush1.msra.mxu0 0.0
  %451 = vmatprep.subr.mxu0 0.0
  %452 = vmatpush1.msra.mxu0 0.0
  %453 = vmatprep.subr.mxu0 0.0
  %454 = vmatpush1.msra.mxu0 0.0
  %455 = vmatprep.subr.mxu0 0.0
  %456 = vmatpush1.msra.mxu0 0.0
  %457 = vmatprep.subr.mxu0 0.0
  %458 = vmatpush1.msra.mxu0 0.0
  %459 = vmatprep.subr.mxu0 0.0
  %460 = vmatpush1.msra.mxu0 0.0
  %461 = vmatprep.subr.mxu0 0.0
  %462 = vmatpush1.msra.mxu0 0.0
  %463 = vmatprep.subr.mxu0 0.0
  %464 = vmatpush1.msra.mxu0 0.0
  %465 = vmatprep.subr.mxu0 0.0
  %466 = vmatpush1.msra.mxu0 0.0
  %467 = vmatprep.subr.mxu0 0.0
  %468 = vmatpush1.msra.mxu0 0.0
  %469 = vmatprep.subr.mxu0 0.0
  %470 = vmatpush1.msra.mxu0 0.0
  %471 = vmatprep.subr.mxu0 0.0
  %472 = vmatpush1.msra.mxu0 0.0
  %473 = vmatprep.subr.mxu0 0.0
  %474 = vmatpush1.msra.mxu0 0.0
  %475 = vmatprep.subr.mxu0 0.0
  %476 = vmatpush1.msra.mxu0 0.0
  %477 = vmatprep.subr.mxu0 0.0
  %478 = vmatpush1.msra.mxu0 0.0
  %479 = vmatprep.subr.mxu0 0.0
  %480 = vmatpush1.msra.mxu0 0.0
  %481 = vmatprep.subr.mxu0 0.0
  %482 = vmatpush1.msra.mxu0 0.0
  %483 = vmatprep.subr.mxu0 0.0
  %484 = vmatpush1.msra.mxu0 0.0
  %485 = vmatprep.subr.mxu0 0.0
  %486 = vmatpush1.msra.mxu0 0.0
  %487 = vmatprep.subr.mxu0 0.0
  %488 = vmatpush1.msra.mxu0 0.0
  %489 = vmatprep.subr.mxu0 0.0
  %490 = vmatpush1.msra.mxu0 0.0
  %491 = vmatprep.subr.mxu0 0.0
  %492 = vmatpush1.msra.mxu0 0.0
  %493 = vmatprep.subr.mxu0 0.0
  %494 = vmatpush1.msra.mxu0 0.0
  %495 = vmatprep.subr.mxu0 0.0
  %496 = vmatpush1.msra.mxu0 0.0
  %497 = vmatprep.subr.mxu0 0.0
  %498 = vmatpush1.msra.mxu0 0.0
  %499 = vmatprep.subr.mxu0 0.0
  %500 = vmatpush1.msra.mxu0 0.0
  %501 = vmatprep.subr.mxu0 0.0
  %502 = vmatpush1.msra.mxu0 0.0
  %503 = vmatprep.subr.mxu0 0.0
  %504 = vmatpush1.msra.mxu0 0.0
  %505 = vmatprep.subr.mxu0 0.0
  %506 = vmatpush1.msra.mxu0 0.0
  %507 = vmatprep.subr.mxu0 0.0
  %508 = vmatpush1.msra.mxu0 0.0
  %509 = vmatprep.subr.mxu0 0.0
  %510 = vmatpush1.msra.mxu0 0.0
  %511 = vmatprep.mubr.f32.mxu0 0.0
  %512 = vmatmul.mubr.f32.gmra.mrb[0].mxu0 %v442
  %v513 = vpop.f32.mrb[0].mxu0
  %v514 = vadd.f32 %v293, %v513
  %v515 = vpop.f32.mrb[0].mxu0
  %516 = vmatprep.mubr.f32.mxu0 0.0
  %517 = vmatmul.mubr.f32.gmra.mrb[0].mxu0 %v445
  %v518 = vpop.f32.mrb[0].mxu0
  %v519 = vadd.f32 %v294, %v518
  %v520 = vpop.f32.mrb[0].mxu0
  %521 = vdwg.mxu0
  %522 = vxpose.xlu0.b32.start [1/16] %v243, 128
  %523 = vxpose.xlu0.b32.cont [2/16] 0.0, 128
  %524 = vxpose.xlu0.b32.cont [3/16] 0.0, 128
  %525 = vxpose.xlu0.b32.cont [4/16] 0.0, 128
  %526 = vxpose.xlu0.b32.cont [5/16] 0.0, 128
  %527 = vxpose.xlu0.b32.cont [6/16] 0.0, 128
  %528 = vxpose.xlu0.b32.cont [7/16] 0.0, 128
  %529 = vxpose.xlu0.b32.cont [8/16] 0.0, 128
  %530 = vxpose.xlu0.b32.cont [9/16] 0.0, 128
  %531 = vxpose.xlu0.b32.cont [10/16] 0.0, 128
  %532 = vxpose.xlu0.b32.cont [11/16] 0.0, 128
  %533 = vxpose.xlu0.b32.cont [12/16] 0.0, 128
  %534 = vxpose.xlu0.b32.cont [13/16] 0.0, 128
  %535 = vxpose.xlu0.b32.cont [14/16] 0.0, 128
  %536 = vxpose.xlu0.b32.cont [15/16] 0.0, 128
  %537 = vxpose.xlu0.b32.end [16/16] 0.0, 128
  %v538 = vpop.trf.xlu0
  %v539 = vpop.trf.xlu0
  %v540 = vpop.trf.xlu0
  %v541 = vpop.trf.xlu0
  %v542 = vpop.trf.xlu0
  %v543 = vpop.trf.xlu0
  %v544 = vpop.trf.xlu0
  %v545 = vpop.trf.xlu0
  %v546 = vpop.trf.xlu0
  %v547 = vpop.trf.xlu0
  %v548 = vpop.trf.xlu0
  %v549 = vpop.trf.xlu0
  %v550 = vpop.trf.xlu0
  %v551 = vpop.trf.xlu0
  %v552 = vpop.trf.xlu0
  %v553 = vpop.trf.xlu0
  %v555 = vsel %vm327, %v538, 0
  %v558 = vsel %vm327, %v539, 0
  %560 = vmatprep.subr.mxu0 0.0
  %561 = vmatpush1.msra.mxu0 %v267
  %562 = vmatprep.subr.mxu0 0.0
  %563 = vmatpush1.msra.mxu0 0.0
  %564 = vmatprep.subr.mxu0 0.0
  %565 = vmatpush1.msra.mxu0 0.0
  %566 = vmatprep.subr.mxu0 0.0
  %567 = vmatpush1.msra.mxu0 0.0
  %568 = vmatprep.subr.mxu0 0.0
  %569 = vmatpush1.msra.mxu0 0.0
  %570 = vmatprep.subr.mxu0 0.0
  %571 = vmatpush1.msra.mxu0 0.0
  %572 = vmatprep.subr.mxu0 0.0
  %573 = vmatpush1.msra.mxu0 0.0
  %574 = vmatprep.subr.mxu0 0.0
  %575 = vmatpush1.msra.mxu0 0.0
  %576 = vmatprep.subr.mxu0 0.0
  %577 = vmatpush1.msra.mxu0 0.0
  %578 = vmatprep.subr.mxu0 0.0
  %579 = vmatpush1.msra.mxu0 0.0
  %580 = vmatprep.subr.mxu0 0.0
  %581 = vmatpush1.msra.mxu0 0.0
  %582 = vmatprep.subr.mxu0 0.0
  %583 = vmatpush1.msra.mxu0 0.0
  %584 = vmatprep.subr.mxu0 0.0
  %585 = vmatpush1.msra.mxu0 0.0
  %586 = vmatprep.subr.mxu0 0.0
  %587 = vmatpush1.msra.mxu0 0.0
  %588 = vmatprep.subr.mxu0 0.0
  %589 = vmatpush1.msra.mxu0 0.0
  %590 = vmatprep.subr.mxu0 0.0
  %591 = vmatpush1.msra.mxu0 0.0
  %592 = vmatprep.subr.mxu0 0.0
  %593 = vmatpush1.msra.mxu0 0.0
  %594 = vmatprep.subr.mxu0 0.0
  %595 = vmatpush1.msra.mxu0 0.0
  %596 = vmatprep.subr.mxu0 0.0
  %597 = vmatpush1.msra.mxu0 0.0
  %598 = vmatprep.subr.mxu0 0.0
  %599 = vmatpush1.msra.mxu0 0.0
  %600 = vmatprep.subr.mxu0 0.0
  %601 = vmatpush1.msra.mxu0 0.0
  %602 = vmatprep.subr.mxu0 0.0
  %603 = vmatpush1.msra.mxu0 0.0
  %604 = vmatprep.subr.mxu0 0.0
  %605 = vmatpush1.msra.mxu0 0.0
  %606 = vmatprep.subr.mxu0 0.0
  %607 = vmatpush1.msra.mxu0 0.0
  %608 = vmatprep.subr.mxu0 0.0
  %609 = vmatpush1.msra.mxu0 0.0
  %610 = vmatprep.subr.mxu0 0.0
  %611 = vmatpush1.msra.mxu0 0.0
  %612 = vmatprep.subr.mxu0 0.0
  %613 = vmatpush1.msra.mxu0 0.0
  %614 = vmatprep.subr.mxu0 0.0
  %615 = vmatpush1.msra.mxu0 0.0
  %616 = vmatprep.subr.mxu0 0.0
  %617 = vmatpush1.msra.mxu0 0.0
  %618 = vmatprep.subr.mxu0 0.0
  %619 = vmatpush1.msra.mxu0 0.0
  %620 = vmatprep.subr.mxu0 0.0
  %621 = vmatpush1.msra.mxu0 0.0
  %622 = vmatprep.subr.mxu0 0.0
  %623 = vmatpush1.msra.mxu0 0.0
  %624 = vmatprep.mubr.f32.mxu0 0.0
  %625 = vmatmul.mubr.f32.gmra.mrb[0].mxu0 %v555
  %v626 = vpop.f32.mrb[0].mxu0
  %v627 = vadd.f32 %v293, %v626
  %v628 = vpop.f32.mrb[0].mxu0
  %629 = vmatprep.mubr.f32.mxu0 0.0
  %630 = vmatmul.mubr.f32.gmra.mrb[0].mxu0 %v558
  %v631 = vpop.f32.mrb[0].mxu0
  %v632 = vadd.f32 %v294, %v631
  %v633 = vpop.f32.mrb[0].mxu0
  %634 = vdwg.mxu0
  %635 = vxpose.xlu0.b32.start [1/16] %v244, 128
  %636 = vxpose.xlu0.b32.cont [2/16] 0.0, 128
  %637 = vxpose.xlu0.b32.cont [3/16] 0.0, 128
  %638 = vxpose.xlu0.b32.cont [4/16] 0.0, 128
  %639 = vxpose.xlu0.b32.cont [5/16] 0.0, 128
  %640 = vxpose.xlu0.b32.cont [6/16] 0.0, 128
  %641 = vxpose.xlu0.b32.cont [7/16] 0.0, 128
  %642 = vxpose.xlu0.b32.cont [8/16] 0.0, 128
  %643 = vxpose.xlu0.b32.cont [9/16] 0.0, 128
  %644 = vxpose.xlu0.b32.cont [10/16] 0.0, 128
  %645 = vxpose.xlu0.b32.cont [11/16] 0.0, 128
  %646 = vxpose.xlu0.b32.cont [12/16] 0.0, 128
  %647 = vxpose.xlu0.b32.cont [13/16] 0.0, 128
  %648 = vxpose.xlu0.b32.cont [14/16] 0.0, 128
  %649 = vxpose.xlu0.b32.cont [15/16] 0.0, 128
  %650 = vxpose.xlu0.b32.end [16/16] 0.0, 128
  %v651 = vpop.trf.xlu0
  %v652 = vpop.trf.xlu0
  %v653 = vpop.trf.xlu0
  %v654 = vpop.trf.xlu0
  %v655 = vpop.trf.xlu0
  %v656 = vpop.trf.xlu0
  %v657 = vpop.trf.xlu0
  %v658 = vpop.trf.xlu0
  %v659 = vpop.trf.xlu0
  %v660 = vpop.trf.xlu0
  %v661 = vpop.trf.xlu0
  %v662 = vpop.trf.xlu0
  %v663 = vpop.trf.xlu0
  %v664 = vpop.trf.xlu0
  %v665 = vpop.trf.xlu0
  %v666 = vpop.trf.xlu0
  %v668 = vsel %vm327, %v651, 0
  %v671 = vsel %vm327, %v652, 0
  %673 = vmatprep.subr.mxu0 0.0
  %674 = vmatpush1.msra.mxu0 %v268
  %675 = vmatprep.subr.mxu0 0.0
  %676 = vmatpush1.msra.mxu0 0.0
  %677 = vmatprep.subr.mxu0 0.0
  %678 = vmatpush1.msra.mxu0 0.0
  %679 = vmatprep.subr.mxu0 0.0
  %680 = vmatpush1.msra.mxu0 0.0
  %681 = vmatprep.subr.mxu0 0.0
  %682 = vmatpush1.msra.mxu0 0.0
  %683 = vmatprep.subr.mxu0 0.0
  %684 = vmatpush1.msra.mxu0 0.0
  %685 = vmatprep.subr.mxu0 0.0
  %686 = vmatpush1.msra.mxu0 0.0
  %687 = vmatprep.subr.mxu0 0.0
  %688 = vmatpush1.msra.mxu0 0.0
  %689 = vmatprep.subr.mxu0 0.0
  %690 = vmatpush1.msra.mxu0 0.0
  %691 = vmatprep.subr.mxu0 0.0
  %692 = vmatpush1.msra.mxu0 0.0
  %693 = vmatprep.subr.mxu0 0.0
  %694 = vmatpush1.msra.mxu0 0.0
  %695 = vmatprep.subr.mxu0 0.0
  %696 = vmatpush1.msra.mxu0 0.0
  %697 = vmatprep.subr.mxu0 0.0
  %698 = vmatpush1.msra.mxu0 0.0
  %699 = vmatprep.subr.mxu0 0.0
  %700 = vmatpush1.msra.mxu0 0.0
  %701 = vmatprep.subr.mxu0 0.0
  %702 = vmatpush1.msra.mxu0 0.0
  %703 = vmatprep.subr.mxu0 0.0
  %704 = vmatpush1.msra.mxu0 0.0
  %705 = vmatprep.subr.mxu0 0.0
  %706 = vmatpush1.msra.mxu0 0.0
  %707 = vmatprep.subr.mxu0 0.0
  %708 = vmatpush1.msra.mxu0 0.0
  %709 = vmatprep.subr.mxu0 0.0
  %710 = vmatpush1.msra.mxu0 0.0
  %711 = vmatprep.subr.mxu0 0.0
  %712 = vmatpush1.msra.mxu0 0.0
  %713 = vmatprep.subr.mxu0 0.0
  %714 = vmatpush1.msra.mxu0 0.0
  %715 = vmatprep.subr.mxu0 0.0
  %716 = vmatpush1.msra.mxu0 0.0
  %717 = vmatprep.subr.mxu0 0.0
  %718 = vmatpush1.msra.mxu0 0.0
  %719 = vmatprep.subr.mxu0 0.0
  %720 = vmatpush1.msra.mxu0 0.0
  %721 = vmatprep.subr.mxu0 0.0
  %722 = vmatpush1.msra.mxu0 0.0
  %723 = vmatprep.subr.mxu0 0.0
  %724 = vmatpush1.msra.mxu0 0.0
  %725 = vmatprep.subr.mxu0 0.0
  %726 = vmatpush1.msra.mxu0 0.0
  %727 = vmatprep.subr.mxu0 0.0
  %728 = vmatpush1.msra.mxu0 0.0
  %729 = vmatprep.subr.mxu0 0.0
  %730 = vmatpush1.msra.mxu0 0.0
  %731 = vmatprep.subr.mxu0 0.0
  %732 = vmatpush1.msra.mxu0 0.0
  %733 = vmatprep.subr.mxu0 0.0
  %734 = vmatpush1.msra.mxu0 0.0
  %735 = vmatprep.subr.mxu0 0.0
  %736 = vmatpush1.msra.mxu0 0.0
  %737 = vmatprep.mubr.f32.mxu0 0.0
  %738 = vmatmul.mubr.f32.gmra.mrb[0].mxu0 %v668
  %v739 = vpop.f32.mrb[0].mxu0
  %v740 = vadd.f32 %v293, %v739
  %v741 = vpop.f32.mrb[0].mxu0
  %742 = vmatprep.mubr.f32.mxu0 0.0
  %743 = vmatmul.mubr.f32.gmra.mrb[0].mxu0 %v671
  %v744 = vpop.f32.mrb[0].mxu0
  %v745 = vadd.f32 %v294, %v744
  %v746 = vpop.f32.mrb[0].mxu0
  %747 = vdwg.mxu0
  %vm748 = vcmask 130048
  %v749 = vsel %vm748, %v401, -inf
  %750 = vmax.xlane.f32.xlu0 %v749
  %v751 = vpop.xlane.xlu0 %750
  %v752 = vsel %vm748, %v406, -inf
  %753 = vmax.xlane.f32.xlu0 %v752
  %v754 = vpop.xlane.xlu0 %753
  %v755 = vsel %vm748, %v514, -inf
  %756 = vmax.xlane.f32.xlu0 %v755
  %v757 = vpop.xlane.xlu0 %756
  %v758 = vsel %vm748, %v519, -inf
  %759 = vmax.xlane.f32.xlu0 %v758
  %v760 = vpop.xlane.xlu0 %759
  %v761 = vsel %vm748, %v627, -inf
  %762 = vmax.xlane.f32.xlu0 %v761
  %v763 = vpop.xlane.xlu0 %762
  %v764 = vsel %vm748, %v632, -inf
  %765 = vmax.xlane.f32.xlu0 %v764
  %v766 = vpop.xlane.xlu0 %765
  %v767 = vsel %vm748, %v740, -inf
  %768 = vmax.xlane.f32.xlu0 %v767
  %v769 = vpop.xlane.xlu0 %768
  %v770 = vsel %vm748, %v745, -inf
  %771 = vmax.xlane.f32.xlu0 %v770
  %v772 = vpop.xlane.xlu0 %771
  %v773 = vsub.f32 %v401, %v751
  %v774 = vsub.f32 %v406, %v754
  %v775 = vsub.f32 %v514, %v757
  %v776 = vsub.f32 %v519, %v760
  %v777 = vsub.f32 %v627, %v763
  %v778 = vsub.f32 %v632, %v766
  %v779 = vsub.f32 %v740, %v769
  %v780 = vsub.f32 %v745, %v772
  %v781 = vmul.f32 %v773, 1.442695
  %v782 = vpow.pop %v781
  %v783 = vmul.f32 %v774, 1.442695
  %v784 = vpow.pop %v783
  %v785 = vmul.f32 %v775, 1.442695
  %v786 = vpow.pop %v785
  %v787 = vmul.f32 %v776, 1.442695
  %v788 = vpow.pop %v787
  %v789 = vmul.f32 %v777, 1.442695
  %v790 = vpow.pop %v789
  %v791 = vmul.f32 %v778, 1.442695
  %v792 = vpow.pop %v791
  %v793 = vmul.f32 %v779, 1.442695
  %v794 = vpow.pop %v793
  %v795 = vmul.f32 %v780, 1.442695
  %v796 = vpow.pop %v795
  %v797 = vsel %vm748, %v782, 0.0
  %798 = vadd.xlane.f32.xlu0 %v797
  %v799 = vpop.xlane.xlu0 %798
  %v800 = vsel %vm748, %v784, 0.0
  %801 = vadd.xlane.f32.xlu0 %v800
  %v802 = vpop.xlane.xlu0 %801
  %v803 = vsel %vm748, %v786, 0.0
  %804 = vadd.xlane.f32.xlu0 %v803
  %v805 = vpop.xlane.xlu0 %804
  %v806 = vsel %vm748, %v788, 0.0
  %807 = vadd.xlane.f32.xlu0 %v806
  %v808 = vpop.xlane.xlu0 %807
  %v809 = vsel %vm748, %v790, 0.0
  %810 = vadd.xlane.f32.xlu0 %v809
  %v811 = vpop.xlane.xlu0 %810
  %v812 = vsel %vm748, %v792, 0.0
  %813 = vadd.xlane.f32.xlu0 %v812
  %v814 = vpop.xlane.xlu0 %813
  %v815 = vsel %vm748, %v794, 0.0
  %816 = vadd.xlane.f32.xlu0 %v815
  %v817 = vpop.xlane.xlu0 %816
  %v818 = vsel %vm748, %v796, 0.0
  %819 = vadd.xlane.f32.xlu0 %v818
  %v820 = vpop.xlane.xlu0 %819
  %v821 = vrcp.pop %v799
  %v822 = vrcp.pop %v802
  %v823 = vrcp.pop %v805
  %v824 = vrcp.pop %v808
  %v825 = vrcp.pop %v811
  %v826 = vrcp.pop %v814
  %v827 = vrcp.pop %v817
  %v828 = vrcp.pop %v820
  %v829 = vmul.f32 %v782, %v821
  %v830 = vmul.f32 %v784, %v822
  %v831 = vmul.f32 %v786, %v823
  %v832 = vmul.f32 %v788, %v824
  %v833 = vmul.f32 %v790, %v825
  %v834 = vmul.f32 %v792, %v826
  %v835 = vmul.f32 %v794, %v827
  %v836 = vmul.f32 %v796, %v828
  %837 = vst.msk [vmem:[%s5] sm:$0xff] %vm748, %v829
  %838 = vst.msk [vmem:[%s5 + $0x8] sm:$0xff] %vm748, %v830
  %839 = vst.msk [vmem:[%s5 + $0x10] sm:$0xff] %vm748, %v831
  %840 = vst.msk [vmem:[%s5 + $0x18] sm:$0xff] %vm748, %v832
  %841 = vst.msk [vmem:[%s5 + $0x20] sm:$0xff] %vm748, %v833
  %842 = vst.msk [vmem:[%s5 + $0x28] sm:$0xff] %vm748, %v834
  %843 = vst.msk [vmem:[%s5 + $0x30] sm:$0xff] %vm748, %v835
  %844 = vst.msk [vmem:[%s5 + $0x38] sm:$0xff] %vm748, %v836
  %846 = vrot.lane.b32.xlu0 %v289, 112
  %v847 = vpop.permute.xlu0 %846
  %v848 = vsel %vm748, %v847, 0
  %v851 = vsel %vm748, %v829, 0
  %v854 = vsel %vm748, %v830, 0
  %856 = vmatprep.subr.mxu0 0.0
  %857 = vmatpush1.xpose.msra.mxu0 %v851
  %858 = vmatprep.subr.mxu0 0.0
  %859 = vmatpush1.xpose.msra.mxu0 %v854
  %860 = vmatprep.subr.mxu0 0.0
  %861 = vmatpush1.xpose.msra.mxu0 0.0
  %862 = vmatprep.subr.mxu0 0.0
  %863 = vmatpush1.xpose.msra.mxu0 0.0
  %864 = vmatprep.subr.mxu0 0.0
  %865 = vmatpush1.xpose.msra.mxu0 0.0
  %866 = vmatprep.subr.mxu0 0.0
  %867 = vmatpush1.xpose.msra.mxu0 0.0
  %868 = vmatprep.subr.mxu0 0.0
  %869 = vmatpush1.xpose.msra.mxu0 0.0
  %870 = vmatprep.subr.mxu0 0.0
  %871 = vmatpush1.xpose.msra.mxu0 0.0
  %872 = vmatprep.subr.mxu0 0.0
  %873 = vmatpush1.xpose.msra.mxu0 0.0
  %874 = vmatprep.subr.mxu0 0.0
  %875 = vmatpush1.xpose.msra.mxu0 0.0
  %876 = vmatprep.subr.mxu0 0.0
  %877 = vmatpush1.xpose.msra.mxu0 0.0
  %878 = vmatprep.subr.mxu0 0.0
  %879 = vmatpush1.xpose.msra.mxu0 0.0
  %880 = vmatprep.subr.mxu0 0.0
  %881 = vmatpush1.xpose.msra.mxu0 0.0
  %882 = vmatprep.subr.mxu0 0.0
  %883 = vmatpush1.xpose.msra.mxu0 0.0
  %884 = vmatprep.subr.mxu0 0.0
  %885 = vmatpush1.xpose.msra.mxu0 0.0
  %886 = vmatprep.subr.mxu0 0.0
  %887 = vmatpush1.xpose.msra.mxu0 0.0
  %888 = vmatprep.subr.mxu0 0.0
  %889 = vmatpush1.xpose.msra.mxu0 0.0
  %890 = vmatprep.subr.mxu0 0.0
  %891 = vmatpush1.xpose.msra.mxu0 0.0
  %892 = vmatprep.subr.mxu0 0.0
  %893 = vmatpush1.xpose.msra.mxu0 0.0
  %894 = vmatprep.subr.mxu0 0.0
  %895 = vmatpush1.xpose.msra.mxu0 0.0
  %896 = vmatprep.subr.mxu0 0.0
  %897 = vmatpush1.xpose.msra.mxu0 0.0
  %898 = vmatprep.subr.mxu0 0.0
  %899 = vmatpush1.xpose.msra.mxu0 0.0
  %900 = vmatprep.subr.mxu0 0.0
  %901 = vmatpush1.xpose.msra.mxu0 0.0
  %902 = vmatprep.subr.mxu0 0.0
  %903 = vmatpush1.xpose.msra.mxu0 0.0
  %904 = vmatprep.subr.mxu0 0.0
  %905 = vmatpush1.xpose.msra.mxu0 0.0
  %906 = vmatprep.subr.mxu0 0.0
  %907 = vmatpush1.xpose.msra.mxu0 0.0
  %908 = vmatprep.subr.mxu0 0.0
  %909 = vmatpush1.xpose.msra.mxu0 0.0
  %910 = vmatprep.subr.mxu0 0.0
  %911 = vmatpush1.xpose.msra.mxu0 0.0
  %912 = vmatprep.subr.mxu0 0.0
  %913 = vmatpush1.xpose.msra.mxu0 0.0
  %914 = vmatprep.subr.mxu0 0.0
  %915 = vmatpush1.xpose.msra.mxu0 0.0
  %916 = vmatprep.subr.mxu0 0.0
  %917 = vmatpush1.xpose.msra.mxu0 0.0
  %918 = vmatprep.subr.mxu0 0.0
  %919 = vmatpush1.xpose.msra.mxu0 0.0
  %920 = vmatprep.mubr.f32.mxu0 0.0
  %921 = vmatmul.mubr.f32.gmra.mrb[0].mxu0 %v848
  %v922 = vpop.f32.mrb[0].mxu0
  %v923 = vadd.f32 0.0, %v922
  %v924 = vpop.f32.mrb[0].mxu0
  %925 = vdwg.mxu0
  %927 = vrot.lane.b32.xlu0 %v290, 112
  %v928 = vpop.permute.xlu0 %927
  %v929 = vsel %vm748, %v928, 0
  %v932 = vsel %vm748, %v831, 0
  %v935 = vsel %vm748, %v832, 0
  %937 = vmatprep.subr.mxu0 0.0
  %938 = vmatpush1.xpose.msra.mxu0 %v932
  %939 = vmatprep.subr.mxu0 0.0
  %940 = vmatpush1.xpose.msra.mxu0 %v935
  %941 = vmatprep.subr.mxu0 0.0
  %942 = vmatpush1.xpose.msra.mxu0 0.0
  %943 = vmatprep.subr.mxu0 0.0
  %944 = vmatpush1.xpose.msra.mxu0 0.0
  %945 = vmatprep.subr.mxu0 0.0
  %946 = vmatpush1.xpose.msra.mxu0 0.0
  %947 = vmatprep.subr.mxu0 0.0
  %948 = vmatpush1.xpose.msra.mxu0 0.0
  %949 = vmatprep.subr.mxu0 0.0
  %950 = vmatpush1.xpose.msra.mxu0 0.0
  %951 = vmatprep.subr.mxu0 0.0
  %952 = vmatpush1.xpose.msra.mxu0 0.0
  %953 = vmatprep.subr.mxu0 0.0
  %954 = vmatpush1.xpose.msra.mxu0 0.0
  %955 = vmatprep.subr.mxu0 0.0
  %956 = vmatpush1.xpose.msra.mxu0 0.0
  %957 = vmatprep.subr.mxu0 0.0
  %958 = vmatpush1.xpose.msra.mxu0 0.0
  %959 = vmatprep.subr.mxu0 0.0
  %960 = vmatpush1.xpose.msra.mxu0 0.0
  %961 = vmatprep.subr.mxu0 0.0
  %962 = vmatpush1.xpose.msra.mxu0 0.0
  %963 = vmatprep.subr.mxu0 0.0
  %964 = vmatpush1.xpose.msra.mxu0 0.0
  %965 = vmatprep.subr.mxu0 0.0
  %966 = vmatpush1.xpose.msra.mxu0 0.0
  %967 = vmatprep.subr.mxu0 0.0
  %968 = vmatpush1.xpose.msra.mxu0 0.0
  %969 = vmatprep.subr.mxu0 0.0
  %970 = vmatpush1.xpose.msra.mxu0 0.0
  %971 = vmatprep.subr.mxu0 0.0
  %972 = vmatpush1.xpose.msra.mxu0 0.0
  %973 = vmatprep.subr.mxu0 0.0
  %974 = vmatpush1.xpose.msra.mxu0 0.0
  %975 = vmatprep.subr.mxu0 0.0
  %976 = vmatpush1.xpose.msra.mxu0 0.0
  %977 = vmatprep.subr.mxu0 0.0
  %978 = vmatpush1.xpose.msra.mxu0 0.0
  %979 = vmatprep.subr.mxu0 0.0
  %980 = vmatpush1.xpose.msra.mxu0 0.0
  %981 = vmatprep.subr.mxu0 0.0
  %982 = vmatpush1.xpose.msra.mxu0 0.0
  %983 = vmatprep.subr.mxu0 0.0
  %984 = vmatpush1.xpose.msra.mxu0 0.0
  %985 = vmatprep.subr.mxu0 0.0
  %986 = vmatpush1.xpose.msra.mxu0 0.0
  %987 = vmatprep.subr.mxu0 0.0
  %988 = vmatpush1.xpose.msra.mxu0 0.0
  %989 = vmatprep.subr.mxu0 0.0
  %990 = vmatpush1.xpose.msra.mxu0 0.0
  %991 = vmatprep.subr.mxu0 0.0
  %992 = vmatpush1.xpose.msra.mxu0 0.0
  %993 = vmatprep.subr.mxu0 0.0
  %994 = vmatpush1.xpose.msra.mxu0 0.0
  %995 = vmatprep.subr.mxu0 0.0
  %996 = vmatpush1.xpose.msra.mxu0 0.0
  %997 = vmatprep.subr.mxu0 0.0
  %998 = vmatpush1.xpose.msra.mxu0 0.0
  %999 = vmatprep.subr.mxu0 0.0
  %1000 = vmatpush1.xpose.msra.mxu0 0.0
  %1001 = vmatprep.mubr.f32.mxu0 0.0
  %1002 = vmatmul.mubr.f32.gmra.mrb[0].mxu0 %v929
  %v1003 = vpop.f32.mrb[0].mxu0
  %v1004 = vadd.f32 0.0, %v1003
  %v1005 = vpop.f32.mrb[0].mxu0
  %1006 = vdwg.mxu0
  %1008 = vrot.lane.b32.xlu0 %v291, 112
  %v1009 = vpop.permute.xlu0 %1008
  %v1010 = vsel %vm748, %v1009, 0
  %v1013 = vsel %vm748, %v833, 0
  %v1016 = vsel %vm748, %v834, 0
  %1018 = vmatprep.subr.mxu0 0.0
  %1019 = vmatpush1.xpose.msra.mxu0 %v1013
  %1020 = vmatprep.subr.mxu0 0.0
  %1021 = vmatpush1.xpose.msra.mxu0 %v1016
  %1022 = vmatprep.subr.mxu0 0.0
  %1023 = vmatpush1.xpose.msra.mxu0 0.0
  %1024 = vmatprep.subr.mxu0 0.0
  %1025 = vmatpush1.xpose.msra.mxu0 0.0
  %1026 = vmatprep.subr.mxu0 0.0
  %1027 = vmatpush1.xpose.msra.mxu0 0.0
  %1028 = vmatprep.subr.mxu0 0.0
  %1029 = vmatpush1.xpose.msra.mxu0 0.0
  %1030 = vmatprep.subr.mxu0 0.0
  %1031 = vmatpush1.xpose.msra.mxu0 0.0
  %1032 = vmatprep.subr.mxu0 0.0
  %1033 = vmatpush1.xpose.msra.mxu0 0.0
  %1034 = vmatprep.subr.mxu0 0.0
  %1035 = vmatpush1.xpose.msra.mxu0 0.0
  %1036 = vmatprep.subr.mxu0 0.0
  %1037 = vmatpush1.xpose.msra.mxu0 0.0
  %1038 = vmatprep.subr.mxu0 0.0
  %1039 = vmatpush1.xpose.msra.mxu0 0.0
  %1040 = vmatprep.subr.mxu0 0.0
  %1041 = vmatpush1.xpose.msra.mxu0 0.0
  %1042 = vmatprep.subr.mxu0 0.0
  %1043 = vmatpush1.xpose.msra.mxu0 0.0
  %1044 = vmatprep.subr.mxu0 0.0
  %1045 = vmatpush1.xpose.msra.mxu0 0.0
  %1046 = vmatprep.subr.mxu0 0.0
  %1047 = vmatpush1.xpose.msra.mxu0 0.0
  %1048 = vmatprep.subr.mxu0 0.0
  %1049 = vmatpush1.xpose.msra.mxu0 0.0
  %1050 = vmatprep.subr.mxu0 0.0
  %1051 = vmatpush1.xpose.msra.mxu0 0.0
  %1052 = vmatprep.subr.mxu0 0.0
  %1053 = vmatpush1.xpose.msra.mxu0 0.0
  %1054 = vmatprep.subr.mxu0 0.0
  %1055 = vmatpush1.xpose.msra.mxu0 0.0
  %1056 = vmatprep.subr.mxu0 0.0
  %1057 = vmatpush1.xpose.msra.mxu0 0.0
  %1058 = vmatprep.subr.mxu0 0.0
  %1059 = vmatpush1.xpose.msra.mxu0 0.0
  %1060 = vmatprep.subr.mxu0 0.0
  %1061 = vmatpush1.xpose.msra.mxu0 0.0
  %1062 = vmatprep.subr.mxu0 0.0
  %1063 = vmatpush1.xpose.msra.mxu0 0.0
  %1064 = vmatprep.subr.mxu0 0.0
  %1065 = vmatpush1.xpose.msra.mxu0 0.0
  %1066 = vmatprep.subr.mxu0 0.0
  %1067 = vmatpush1.xpose.msra.mxu0 0.0
  %1068 = vmatprep.subr.mxu0 0.0
  %1069 = vmatpush1.xpose.msra.mxu0 0.0
  %1070 = vmatprep.subr.mxu0 0.0
  %1071 = vmatpush1.xpose.msra.mxu0 0.0
  %1072 = vmatprep.subr.mxu0 0.0
  %1073 = vmatpush1.xpose.msra.mxu0 0.0
  %1074 = vmatprep.subr.mxu0 0.0
  %1075 = vmatpush1.xpose.msra.mxu0 0.0
  %1076 = vmatprep.subr.mxu0 0.0
  %1077 = vmatpush1.xpose.msra.mxu0 0.0
  %1078 = vmatprep.subr.mxu0 0.0
  %1079 = vmatpush1.xpose.msra.mxu0 0.0
  %1080 = vmatprep.subr.mxu0 0.0
  %1081 = vmatpush1.xpose.msra.mxu0 0.0
  %1082 = vmatprep.mubr.f32.mxu0 0.0
  %1083 = vmatmul.mubr.f32.gmra.mrb[0].mxu0 %v1010
  %v1084 = vpop.f32.mrb[0].mxu0
  %v1085 = vadd.f32 0.0, %v1084
  %v1086 = vpop.f32.mrb[0].mxu0
  %1087 = vdwg.mxu0
  %1089 = vrot.lane.b32.xlu0 %v292, 112
  %v1090 = vpop.permute.xlu0 %1089
  %v1091 = vsel %vm748, %v1090, 0
  %v1094 = vsel %vm748, %v835, 0
  %v1097 = vsel %vm748, %v836, 0
  %1099 = vmatprep.subr.mxu0 0.0
  %1100 = vmatpush1.xpose.msra.mxu0 %v1094
  %1101 = vmatprep.subr.mxu0 0.0
  %1102 = vmatpush1.xpose.msra.mxu0 %v1097
  %1103 = vmatprep.subr.mxu0 0.0
  %1104 = vmatpush1.xpose.msra.mxu0 0.0
  %1105 = vmatprep.subr.mxu0 0.0
  %1106 = vmatpush1.xpose.msra.mxu0 0.0
  %1107 = vmatprep.subr.mxu0 0.0
  %1108 = vmatpush1.xpose.msra.mxu0 0.0
  %1109 = vmatprep.subr.mxu0 0.0
  %1110 = vmatpush1.xpose.msra.mxu0 0.0
  %1111 = vmatprep.subr.mxu0 0.0
  %1112 = vmatpush1.xpose.msra.mxu0 0.0
  %1113 = vmatprep.subr.mxu0 0.0
  %1114 = vmatpush1.xpose.msra.mxu0 0.0
  %1115 = vmatprep.subr.mxu0 0.0
  %1116 = vmatpush1.xpose.msra.mxu0 0.0
  %1117 = vmatprep.subr.mxu0 0.0
  %1118 = vmatpush1.xpose.msra.mxu0 0.0
  %1119 = vmatprep.subr.mxu0 0.0
  %1120 = vmatpush1.xpose.msra.mxu0 0.0
  %1121 = vmatprep.subr.mxu0 0.0
  %1122 = vmatpush1.xpose.msra.mxu0 0.0
  %1123 = vmatprep.subr.mxu0 0.0
  %1124 = vmatpush1.xpose.msra.mxu0 0.0
  %1125 = vmatprep.subr.mxu0 0.0
  %1126 = vmatpush1.xpose.msra.mxu0 0.0
  %1127 = vmatprep.subr.mxu0 0.0
  %1128 = vmatpush1.xpose.msra.mxu0 0.0
  %1129 = vmatprep.subr.mxu0 0.0
  %1130 = vmatpush1.xpose.msra.mxu0 0.0
  %1131 = vmatprep.subr.mxu0 0.0
  %1132 = vmatpush1.xpose.msra.mxu0 0.0
  %1133 = vmatprep.subr.mxu0 0.0
  %1134 = vmatpush1.xpose.msra.mxu0 0.0
  %1135 = vmatprep.subr.mxu0 0.0
  %1136 = vmatpush1.xpose.msra.mxu0 0.0
  %1137 = vmatprep.subr.mxu0 0.0
  %1138 = vmatpush1.xpose.msra.mxu0 0.0
  %1139 = vmatprep.subr.mxu0 0.0
  %1140 = vmatpush1.xpose.msra.mxu0 0.0
  %1141 = vmatprep.subr.mxu0 0.0
  %1142 = vmatpush1.xpose.msra.mxu0 0.0
  %1143 = vmatprep.subr.mxu0 0.0
  %1144 = vmatpush1.xpose.msra.mxu0 0.0
  %1145 = vmatprep.subr.mxu0 0.0
  %1146 = vmatpush1.xpose.msra.mxu0 0.0
  %1147 = vmatprep.subr.mxu0 0.0
  %1148 = vmatpush1.xpose.msra.mxu0 0.0
  %1149 = vmatprep.subr.mxu0 0.0
  %1150 = vmatpush1.xpose.msra.mxu0 0.0
  %1151 = vmatprep.subr.mxu0 0.0
  %1152 = vmatpush1.xpose.msra.mxu0 0.0
  %1153 = vmatprep.subr.mxu0 0.0
  %1154 = vmatpush1.xpose.msra.mxu0 0.0
  %1155 = vmatprep.subr.mxu0 0.0
  %1156 = vmatpush1.xpose.msra.mxu0 0.0
  %1157 = vmatprep.subr.mxu0 0.0
  %1158 = vmatpush1.xpose.msra.mxu0 0.0
  %1159 = vmatprep.subr.mxu0 0.0
  %1160 = vmatpush1.xpose.msra.mxu0 0.0
  %1161 = vmatprep.subr.mxu0 0.0
  %1162 = vmatpush1.xpose.msra.mxu0 0.0
  %1163 = vmatprep.mubr.f32.mxu0 0.0
  %1164 = vmatmul.mubr.f32.gmra.mrb[0].mxu0 %v1091
  %v1165 = vpop.f32.mrb[0].mxu0
  %v1166 = vadd.f32 0.0, %v1165
  %v1167 = vpop.f32.mrb[0].mxu0
  %1168 = vdwg.mxu0
  %1170 = vset.pattern.permute.xlu0 0
  %1171 = vperm.xlu0 %1170, %v51
  %v1172 = vpop.permute.xlu0 %1171
  %1175 = vset.pattern.permute.xlu0 0
  %1176 = vperm.xlu0 %1175, %v52
  %v1177 = vpop.permute.xlu0 %1176
  %1180 = vset.pattern.permute.xlu0 0
  %1181 = vperm.xlu0 %1180, %v53
  %v1182 = vpop.permute.xlu0 %1181
  %1185 = vset.pattern.permute.xlu0 0
  %1186 = vperm.xlu0 %1185, %v54
  %v1187 = vpop.permute.xlu0 %1186
  %v1190 = vsel %vm55, %v35, 0
  %v1193 = vsel %vm55, %v36, 0
  %v1196 = vsel %vm55, %v37, 0
  %v1199 = vsel %vm55, %v38, 0
  %1201 = vmatprep.subr.mxu0 0.0
  %1202 = vmatpush1.msra.mxu0 %v923
  %1203 = vmatprep.subr.mxu0 0.0
  %1204 = vmatpush1.msra.mxu0 %v1004
  %1205 = vmatprep.subr.mxu0 0.0
  %1206 = vmatpush1.msra.mxu0 %v1085
  %1207 = vmatprep.subr.mxu0 0.0
  %1208 = vmatpush1.msra.mxu0 %v1166
  %1209 = vmatprep.subr.mxu0 0.0
  %1210 = vmatpush1.msra.mxu0 0.0
  %1211 = vmatprep.subr.mxu0 0.0
  %1212 = vmatpush1.msra.mxu0 0.0
  %1213 = vmatprep.subr.mxu0 0.0
  %1214 = vmatpush1.msra.mxu0 0.0
  %1215 = vmatprep.subr.mxu0 0.0
  %1216 = vmatpush1.msra.mxu0 0.0
  %1217 = vmatprep.subr.mxu0 0.0
  %1218 = vmatpush1.msra.mxu0 0.0
  %1219 = vmatprep.subr.mxu0 0.0
  %1220 = vmatpush1.msra.mxu0 0.0
  %1221 = vmatprep.subr.mxu0 0.0
  %1222 = vmatpush1.msra.mxu0 0.0
  %1223 = vmatprep.subr.mxu0 0.0
  %1224 = vmatpush1.msra.mxu0 0.0
  %1225 = vmatprep.subr.mxu0 0.0
  %1226 = vmatpush1.msra.mxu0 0.0
  %1227 = vmatprep.subr.mxu0 0.0
  %1228 = vmatpush1.msra.mxu0 0.0
  %1229 = vmatprep.subr.mxu0 0.0
  %1230 = vmatpush1.msra.mxu0 0.0
  %1231 = vmatprep.subr.mxu0 0.0
  %1232 = vmatpush1.msra.mxu0 0.0
  %1233 = vmatprep.subr.mxu0 0.0
  %1234 = vmatpush1.msra.mxu0 0.0
  %1235 = vmatprep.subr.mxu0 0.0
  %1236 = vmatpush1.msra.mxu0 0.0
  %1237 = vmatprep.subr.mxu0 0.0
  %1238 = vmatpush1.msra.mxu0 0.0
  %1239 = vmatprep.subr.mxu0 0.0
  %1240 = vmatpush1.msra.mxu0 0.0
  %1241 = vmatprep.subr.mxu0 0.0
  %1242 = vmatpush1.msra.mxu0 0.0
  %1243 = vmatprep.subr.mxu0 0.0
  %1244 = vmatpush1.msra.mxu0 0.0
  %1245 = vmatprep.subr.mxu0 0.0
  %1246 = vmatpush1.msra.mxu0 0.0
  %1247 = vmatprep.subr.mxu0 0.0
  %1248 = vmatpush1.msra.mxu0 0.0
  %1249 = vmatprep.subr.mxu0 0.0
  %1250 = vmatpush1.msra.mxu0 0.0
  %1251 = vmatprep.subr.mxu0 0.0
  %1252 = vmatpush1.msra.mxu0 0.0
  %1253 = vmatprep.subr.mxu0 0.0
  %1254 = vmatpush1.msra.mxu0 0.0
  %1255 = vmatprep.subr.mxu0 0.0
  %1256 = vmatpush1.msra.mxu0 0.0
  %1257 = vmatprep.subr.mxu0 0.0
  %1258 = vmatpush1.msra.mxu0 0.0
  %1259 = vmatprep.subr.mxu0 0.0
  %1260 = vmatpush1.msra.mxu0 0.0
  %1261 = vmatprep.subr.mxu0 0.0
  %1262 = vmatpush1.msra.mxu0 0.0
  %1263 = vmatprep.subr.mxu0 0.0
  %1264 = vmatpush1.msra.mxu0 0.0
  %1265 = vmatprep.mubr.f32.mxu0 0.0
  %1266 = vmatmul.mubr.f32.gmra.mrb[0].mxu0 %v1190
  %v1267 = vpop.f32.mrb[0].mxu0
  %v1268 = vadd.f32 %v1172, %v1267
  %v1269 = vpop.f32.mrb[0].mxu0
  %1270 = vmatprep.mubr.f32.mxu0 0.0
  %1271 = vmatmul.mubr.f32.gmra.mrb[0].mxu0 %v1193
  %v1272 = vpop.f32.mrb[0].mxu0
  %v1273 = vadd.f32 %v1177, %v1272
  %v1274 = vpop.f32.mrb[0].mxu0
  %1275 = vmatprep.mubr.f32.mxu0 0.0
  %1276 = vmatmul.mubr.f32.gmra.mrb[0].mxu0 %v1196
  %v1277 = vpop.f32.mrb[0].mxu0
  %v1278 = vadd.f32 %v1182, %v1277
  %v1279 = vpop.f32.mrb[0].mxu0
  %1280 = vmatprep.mubr.f32.mxu0 0.0
  %1281 = vmatmul.mubr.f32.gmra.mrb[0].mxu0 %v1199
  %v1282 = vpop.f32.mrb[0].mxu0
  %v1283 = vadd.f32 %v1187, %v1282
  %v1284 = vpop.f32.mrb[0].mxu0
  %1285 = vdwg.mxu0
  %1286 = vst.msk [vmem:[%s4] sm:$0xff] %vm748, %v1268
  %1287 = vst.msk [vmem:[%s4 + $0x8] sm:$0xff] %vm748, %v1273
  %1288 = vst.msk [vmem:[%s4 + $0x10] sm:$0xff] %vm748, %v1278
  %1289 = vst.msk [vmem:[%s4 + $0x18] sm:$0xff] %vm748, %v1283
  // Predicated region
  $region18: #{detr_attention.1} parent=0 // pred_check
    _
  $region19: #{detr_attention.1} parent=0 // pred_check_branch
    %1291 = sbr.rel (0) target = $region21
  $region20: #{detr_attention.1} parent=0 // pred_region
    _
  $region21: #{detr_attention.1} parent=0 // pred_fallthru
    _
  // Predicated region
  $region22: #{detr_attention.1} parent=0 // pred_check
    _
  $region23: #{detr_attention.1} parent=0 // pred_check_branch
    %1293 = sbr.rel (0) target = $region25
  $region24: #{detr_attention.1} parent=0 // pred_region
    _
  $region25: #{detr_attention.1} parent=0 // pred_fallthru
    _
  // Predicated region
  $region26: #{detr_attention.1} parent=0 // pred_check
    _
  $region27: #{detr_attention.1} parent=0 // pred_check_branch
    %1295 = sbr.rel (0) target = $region29
  $region28: #{detr_attention.1} parent=0 // pred_region
    _
  $region29: #{detr_attention.1} parent=0 // pred_fallthru
    _
  // Predicated region
  $region30: #{detr_attention.1} parent=0 // pred_check
    _
  $region31: #{detr_attention.1} parent=0 // pred_check_branch
    %1297 = sbr.rel (0) target = $region33
  $region32: #{detr_attention.1} parent=0 // pred_region
    _
  $region33: #{detr_attention.1} parent=0 // pred_fallthru
    _

</llo_original>
